<compile_context>
chip_gen: v7x
topology: tpu7x:2x2x1
jax: 0.10.0
libtpu: 0.0.40
codegen_flags: <defaults>
</compile_context>

<pallas_src>
import jax
import jax.numpy as jnp
from jax.experimental import pallas as pl
from jax.experimental.pallas import tpu as pltpu


def _round_up(x, m):
    return ((x + m - 1) // m) * m


# Tile caps, safe across v5e / v6e / v7x (lane-dense, (8,128)-aligned).
_TM_CAP = 512
_TN_CAP = 1024
_TK_CAP = 512
_VMEM_BUDGET = 24 * 1024 * 1024      # target double-buffered tile footprint
_VMEM_LIMIT = 32 * 1024 * 1024       # scoped VMEM limit handed to Mosaic
_PALLAS_MIN_WORK = 256 ** 3          # below this, plain jnp.dot wins


def _tile_vmem_bytes(tm, tn, tk, in_bytes, out_bytes, full_k):
    """Approximate double-buffered VMEM footprint of one grid step."""
    b = 2 * tm * tk * in_bytes          # x tile (double buffered)
    b += 2 * tk * tn * in_bytes         # W tile (double buffered)
    b += 2 * tm * tn * out_bytes        # output tile
    b += 2 * tn * 4                     # bias row (f32)
    if not full_k:
        b += tm * tn * 4                # f32 accumulator scratch
    return b


# ----------------------------- kernels ------------------------------------


def _fullk_kernel(x_ref, w_ref, b_ref, o_ref):
    """Single-K-step tile: y = x @ W + b, bias fused into the only store."""
    acc = jnp.dot(x_ref[...], w_ref[...], preferred_element_type=jnp.float32)
    o_ref[...] = (acc + b_ref[...]).astype(o_ref.dtype)


def _reduce_kernel(x_ref, w_ref, b_ref, o_ref, acc_ref):
    """K-reduction tile with f32 accumulator; bias folded into the init."""
    k = pl.program_id(2)

    @pl.when(k == 0)
    def _():
        acc_ref[...] = jnp.broadcast_to(b_ref[...], acc_ref.shape)

    acc_ref[...] += jnp.dot(
        x_ref[...], w_ref[...], preferred_element_type=jnp.float32
    )

    @pl.when(k == pl.num_programs(2) - 1)
    def _():
        o_ref[...] = acc_ref[...].astype(o_ref.dtype)


# --------------------------- parameter prep -------------------------------


def prepare_projector_params(weight, bias, compute_dtype=jnp.bfloat16,
                             max_tk=None):
    """One-time (load-time) parameter prep for `projector_forward`.

    weight: (decoder_hidden, encoder_hidden)  -- PyTorch nn.Linear layout
    bias:   (decoder_hidden,)
    compute_dtype: MXU input dtype (bf16 default; accumulation stays f32).
    max_tk: optional cap on the K tile (mainly for testing the reduction path).
    """
    n_out, k_in = weight.shape
    in_bytes = jnp.dtype(compute_dtype).itemsize

    k128 = _round_up(k_in, 128)
    tn = min(_TN_CAP, _round_up(n_out, 128))

    # Full-K (single reduction step) whenever full-K tiles fit the VMEM budget.
    if max_tk is None:
        tk_cap = k128
    else:
        tk_cap = max(128, _round_up(min(max_tk, k128), 128))
    full_k = (tk_cap >= k128) and (
        _tile_vmem_bytes(256, tn, k128, in_bytes, 4, True) <= _VMEM_BUDGET
    )
    tk = k128 if full_k else min(_TK_CAP, tk_cap)

    k_pad = _round_up(k_in, tk)
    n_pad = _round_up(n_out, tn)

    # Transpose to (K, N) and zero-pad ONCE here, outside the hot path.
    w_kn = jnp.asarray(weight, compute_dtype).T
    w_kn = jnp.pad(w_kn, ((0, k_pad - k_in), (0, n_pad - n_out)))
    b_row = jnp.pad(jnp.asarray(bias, jnp.float32), (0, n_pad - n_out))
    b_row = b_row.reshape(1, n_pad)

    return {
        "w_kn": w_kn,
        "b_row": b_row,
        "n_out": n_out,
        "k_in": k_in,
        "tn": tn,
        "tk": tk,
        "full_k": full_k,
        "compute_dtype": compute_dtype,
    }


# ------------------------------ forward ------------------------------------


def projector_forward(x, params, out_dtype=None, force_pallas=False):
    """y = x @ weight.T + bias with PyTorch nn.Linear semantics.

    x: (..., encoder_hidden)  ->  (..., decoder_hidden)
    """
    w_kn = params["w_kn"]
    b_row = params["b_row"]
    n_out = params["n_out"]
    k_in = params["k_in"]
    tn = params["tn"]
    tk = params["tk"]
    full_k = params["full_k"]
    cdtype = params["compute_dtype"]
    if out_dtype is None:
        out_dtype = x.dtype

    *lead, k = x.shape
    assert k == k_in, f"expected last dim {k_in}, got {k}"
    m = 1
    for d in lead:
        m *= d
    m = max(m, 1)

    k_pad, n_pad = w_kn.shape
    x2d = x.reshape(m, k).astype(cdtype)

    # Tiny problems: a 1-step pallas_call is pure launch/DMA overhead.
    if (not force_pallas) and (m * k_in * n_out < _PALLAS_MIN_WORK):
        y = jnp.dot(x2d, w_kn[:k_in, :n_out],
                    preferred_element_type=jnp.float32) + b_row[0, :n_out]
        return y.astype(out_dtype).reshape(*lead, n_out)

    # Pad only K (required for a correct reduction; the cast above fuses with
    # the pad).  M edge is handled by a cdiv grid (partial boundary block whose
    # extra rows only feed output rows that are never materialized).
    if k_pad != k:
        x2d = jnp.pad(x2d, ((0, 0), (0, k_pad - k)))

    in_bytes = jnp.dtype(cdtype).itemsize
    out_bytes = jnp.dtype(out_dtype).itemsize

    tm = min(_TM_CAP, _round_up(m, 8))
    while tm > 8 and _tile_vmem_bytes(tm, tn, tk, in_bytes, out_bytes,
                                      full_k) > _VMEM_BUDGET:
        tm = _round_up(tm // 2, 8)

    nm = pl.cdiv(m, tm)
    nn = n_pad // tn
    nk = k_pad // tk

    flops = 2 * m * k_pad * n_pad

    if full_k:
        # Weight-stationary: N outer, M inner -> each W column block is DMA'd
        # exactly once and stays resident across the whole M sweep.
        bytes_accessed = (nn * m * k_pad * in_bytes
                          + k_pad * n_pad * in_bytes
                          + m * n_pad * out_bytes)
        out2d = pl.pallas_call(
            _fullk_kernel,
            out_shape=jax.ShapeDtypeStruct((m, n_pad), out_dtype),
            grid_spec=pltpu.PrefetchScalarGridSpec(
                num_scalar_prefetch=0,
                grid=(nn, nm),
                in_specs=[
                    pl.BlockSpec((tm, k_pad), lambda j, i: (i, 0)),   # x
                    pl.BlockSpec((k_pad, tn), lambda j, i: (0, j)),   # W^T
                    pl.BlockSpec((1, tn), lambda j, i: (0, j)),       # bias
                ],
                out_specs=pl.BlockSpec((tm, tn), lambda j, i: (i, j)),
            ),
            compiler_params=pltpu.CompilerParams(
                dimension_semantics=("parallel", "parallel"),
                vmem_limit_bytes=_VMEM_LIMIT,
            ),
            cost_estimate=pl.CostEstimate(
                flops=flops, transcendentals=0, bytes_accessed=bytes_accessed),
        )(x2d, w_kn, b_row)
    else:
        bytes_accessed = (nn * m * k_pad * in_bytes
                          + nm * k_pad * n_pad * in_bytes
                          + m * n_pad * out_bytes)
        out2d = pl.pallas_call(
            _reduce_kernel,
            out_shape=jax.ShapeDtypeStruct((m, n_pad), out_dtype),
            grid_spec=pltpu.PrefetchScalarGridSpec(
                num_scalar_prefetch=0,
                grid=(nm, nn, nk),
                in_specs=[
                    pl.BlockSpec((tm, tk), lambda i, j, kk: (i, kk)),   # x
                    pl.BlockSpec((tk, tn), lambda i, j, kk: (kk, j)),   # W^T
                    pl.BlockSpec((1, tn), lambda i, j, kk: (0, j)),     # bias
                ],
                out_specs=pl.BlockSpec((tm, tn), lambda i, j, kk: (i, j)),
                scratch_shapes=[pltpu.VMEM((tm, tn), jnp.float32)],
            ),
            compiler_params=pltpu.CompilerParams(
                dimension_semantics=("parallel", "parallel", "arbitrary"),
                vmem_limit_bytes=_VMEM_LIMIT,
            ),
            cost_estimate=pl.CostEstimate(
                flops=flops, transcendentals=0, bytes_accessed=bytes_accessed),
        )(x2d, w_kn, b_row)

    out2d = out2d[:, :n_out]
    return out2d.reshape(*lead, n_out)


# ------------------------------ demo / test --------------------------------

if __name__ == "__main__":
    key = jax.random.PRNGKey(0)
    kx, kw, kb, kx2, kw2, kb2 = jax.random.split(key, 6)

    # --- Test 1: small shapes consistent with the module (full-K path) ---
    batch, seq, enc_h, dec_h = 2, 8, 32, 64
    x = jax.random.normal(kx, (batch, seq, enc_h), dtype=jnp.float32)
    # Deterministic synthetic parameters (no checkpoint).
    # TODO(synk): torch.load/torch.save checkpoint I/O from the original module
    #             is not reproduced here.
    weight = jax.random.normal(kw, (dec_h, enc_h), dtype=jnp.float32) * 0.02
    bias = jax.random.normal(kb, (dec_h,), dtype=jnp.float32) * 0.01

    params = prepare_projector_params(weight, bias)          # bf16 default
    y = jax.block_until_ready(projector_forward(x, params, force_pallas=True))

    # Reference with matching input quantization (bf16 inputs, f32 accumulate).
    x_b = x.astype(jnp.bfloat16).astype(jnp.float32)
    w_b = weight.astype(jnp.bfloat16).astype(jnp.float32)
    y_ref = x_b @ w_b.T + bias
    assert y.shape == (batch, seq, dec_h)
    assert jnp.allclose(y, y_ref, atol=2e-3, rtol=2e-3)

    # --- Test 2: force the multi-K accumulator path (max_tk=128) ---
    b2n, s2n, enc2, dec2 = 2, 16, 384, 256
    x2 = jax.random.normal(kx2, (b2n, s2n, enc2), dtype=jnp.float32)
    w2 = jax.random.normal(kw2, (dec2, enc2), dtype=jnp.float32) * 0.02
    bv2 = jax.random.normal(kb2, (dec2,), dtype=jnp.float32) * 0.01

    params2 = prepare_projector_params(w2, bv2, max_tk=128)
    assert not params2["full_k"]
    y2 = jax.block_until_ready(
        projector_forward(x2, params2, force_pallas=True))

    x2_b = x2.astype(jnp.bfloat16).astype(jnp.float32)
    w2_b = w2.astype(jnp.bfloat16).astype(jnp.float32)
    y2_ref = x2_b @ w2_b.T + bv2
    assert y2.shape == (b2n, s2n, dec2)
    assert jnp.allclose(y2, y2_ref, atol=5e-3, rtol=5e-3)

    print("KERNEL_OK")
</pallas_src>

<mosaic_0001>
module attributes {stable_mosaic.version = 11 : i64} {
  func.func @_fullk_kernel(%arg0: i32, %arg1: i32, %arg2: memref<16x128xbf16, #tpu.memory_space<vmem>>, %arg3: memref<128x128xbf16, #tpu.memory_space<vmem>>, %arg4: memref<1x128xf32, #tpu.memory_space<vmem>>, %arg5: memref<16x128xf32, #tpu.memory_space<vmem>>) attributes {dimension_semantics = [#tpu.dimension_semantics<parallel>, #tpu.dimension_semantics<parallel>], iteration_bounds = array<i64: 1, 1>, scalar_prefetch = 0 : i64, scratch_operands = 0 : i64, tpu.core_type = #tpu.core_type<tc>, window_params = [{transform_indices = @transform_0, window_bounds = array<i64: 16, 128>}, {transform_indices = @transform_1, window_bounds = array<i64: 128, 128>}, {transform_indices = @transform_2, window_bounds = array<i64: 1, 128>}, {transform_indices = @transform_3, window_bounds = array<i64: 16, 128>}]} {
    %c0 = arith.constant 0 : index
    %c0_0 = arith.constant 0 : index
    %0 = vector.load %arg2[%c0, %c0_0] : memref<16x128xbf16, #tpu.memory_space<vmem>>, vector<16x128xbf16>
    %c0_1 = arith.constant 0 : index
    %c0_2 = arith.constant 0 : index
    %1 = vector.load %arg3[%c0_1, %c0_2] : memref<128x128xbf16, #tpu.memory_space<vmem>>, vector<128x128xbf16>
    %cst = arith.constant dense<0.000000e+00> : vector<16x128xf32>
    %2 = tpu.matmul %0, %1, %cst {dimension_numbers = #tpu.dot_dimension_numbers<[1], [0], [0], [1], [0, 0, 1, 1], [], []>} : vector<16x128xbf16>, vector<128x128xbf16>, vector<16x128xf32> -> vector<16x128xf32>
    %c0_3 = arith.constant 0 : index
    %c0_4 = arith.constant 0 : index
    %3 = vector.load %arg4[%c0_3, %c0_4] : memref<1x128xf32, #tpu.memory_space<vmem>>, vector<1x128xf32>
    %4 = vector.broadcast %3 : vector<1x128xf32> to vector<16x128xf32>
    %5 = arith.addf %2, %4 : vector<16x128xf32>
    %c0_5 = arith.constant 0 : index
    %c0_6 = arith.constant 0 : index
    %6 = vector.load %arg5[%c0_5, %c0_6] : memref<16x128xf32, #tpu.memory_space<vmem>>, vector<16x128xf32>
    tpu.vector_store %arg5[%c0_5, %c0_6], %5 {strides = array<i32>} : memref<16x128xf32, #tpu.memory_space<vmem>>, vector<16x128xf32>,
    return
  }
  func.func @transform_0(%arg0: i32, %arg1: i32) -> (i32, i32) {
    %c0_i32 = arith.constant 0 : i32
    %c0_i32_0 = arith.constant 0 : i32
    return %arg1, %c0_i32 : i32, i32
  }
  func.func @transform_1(%arg0: i32, %arg1: i32) -> (i32, i32) {
    %c0_i32 = arith.constant 0 : i32
    %c0_i32_0 = arith.constant 0 : i32
    return %c0_i32, %arg0 : i32, i32
  }
  func.func @transform_2(%arg0: i32, %arg1: i32) -> (i32, i32) {
    %c0_i32 = arith.constant 0 : i32
    %c0_i32_0 = arith.constant 0 : i32
    return %c0_i32, %arg0 : i32, i32
  }
  func.func @transform_3(%arg0: i32, %arg1: i32) -> (i32, i32) {
    %c0_i32 = arith.constant 0 : i32
    return %arg1, %arg0 : i32, i32
  }
}

</mosaic_0001>

<llo_original>
// kernel: tpu_custom_call.1
$region0: #{tpu_custom_call.1}
  #allocation0 [shape = 'u32[]', space=smem, size = 0x4, offset = 0x4, fixed_abs, tag = 'smem constant byte address 0x4 - core index']
  #allocation1 [shape = 'u32[144,128]{1,0:T(1,128)}', space=vmem, size = 0x12000, scoped, tag = 'internal scratch']
  %s0 = inlined_call_operand.hbm [shape: bf16[16,128], index: 0, kind: input, shape index: {}]
  %s1 = inlined_call_operand.hbm [shape: bf16[128,128], index: 1, kind: input, shape index: {}]
  %s2 = inlined_call_operand.vmem [shape: f32[1,128], index: 2, kind: input, shape index: {}]
  %s3 = inlined_call_operand.hbm [shape: f32[16,128], index: 3, kind: output, shape index: {}]
  %s4 = sld [smem:[#allocation0]]
  $region30: #{tpu_custom_call.1} parent=0
    _
  %s6 = ssub.s32 1, %s4
  %s7 = scalar_select 0, %s6, %s4
  $region1: #{tpu_custom_call.1} parent=0
    #allocation2 [shape = 'u8[4096]{0}', space=vmem, size = 0x1000, scoped, tag = 'input window, operand 0, single buffered']
    #allocation3 [shape = 's32[1]{0}', space=sflag, size = 0x4, scoped, tag = 'scoped memory for tpu_custom_call.1']
    #allocation4 [shape = 's32[1]{0}', space=sflag, size = 0x4, scoped, tag = 'scoped memory for tpu_custom_call.1']
    #allocation5 [shape = 'u8[32768]{0}', space=vmem, size = 0x8000, scoped, tag = 'input window, operand 1, single buffered']
    #allocation6 [shape = 's32[1]{0}', space=sflag, size = 0x4, scoped, tag = 'scoped memory for tpu_custom_call.1']
    #allocation7 [shape = 'u8[8192]{0}', space=vmem, size = 0x2000, scoped, tag = 'output window, operand 0, single buffered']
    %8 = vsyncpa [#allocation3], 0
    %9 = vsyncpa [#allocation6], 0
    %10 = vsyncpa [#allocation4], 0
    // Predicated region
    $region2: #{tpu_custom_call.1} parent=1 // pred_check
      _
    $region3: #{tpu_custom_call.1} parent=1 // pred_check_branch
      %12 = sbr.rel (0) target = $region5
    $region4: #{tpu_custom_call.1} parent=1 // pred_region
      %s14 = ssub.s32 128, 128
      %15 = vsyncadd [#allocation3], %s14
      %s16 = sshll.u32 [#allocation2], 4
      %s17 = int_to_ptr.vmem [resolvable:$true] %s16
      %22 = dma.hbm_to_vmem [thread:$0]  %s0, 128, %s17, [#allocation3], 64, 64, 4
    $region5: #{tpu_custom_call.1} parent=1 // pred_fallthru
      _
    // Predicated region
    $region6: #{tpu_custom_call.1} parent=1 // pred_check
      _
    $region7: #{tpu_custom_call.1} parent=1 // pred_check_branch
      %24 = sbr.rel (0) target = $region9
    $region8: #{tpu_custom_call.1} parent=1 // pred_region
      %s26 = ssub.s32 1024, 1024
      %27 = vsyncadd [#allocation6], %s26
      %s28 = sshll.u32 [#allocation5], 4
      %s29 = int_to_ptr.vmem [resolvable:$true] %s28
      %34 = dma.hbm_to_vmem [thread:$0]  %s1, 1024, %s29, [#allocation6], 64, 64, 4
    $region9: #{tpu_custom_call.1} parent=1 // pred_fallthru
      _
    // Predicated region
    $region10: #{tpu_custom_call.1} parent=1 // pred_check
      _
    $region11: #{tpu_custom_call.1} parent=1 // pred_check_branch
      %36 = sbr.rel (0) target = $region13
    $region12: #{tpu_custom_call.1} parent=1 // pred_region
      _
    $region13: #{tpu_custom_call.1} parent=1 // pred_fallthru
      _
    // Predicated region
    $region14: #{tpu_custom_call.1} parent=1 // pred_check
      _
    $region15: #{tpu_custom_call.1} parent=1 // pred_check_branch
      %38 = sbr.rel (0) target = $region17
    $region16: #{tpu_custom_call.1} parent=1 // pred_region
      %39 = dma.done [#allocation3], 128
    $region17: #{tpu_custom_call.1} parent=1 // pred_fallthru
      _
    // Predicated region
    $region18: #{tpu_custom_call.1} parent=1 // pred_check
      _
    $region19: #{tpu_custom_call.1} parent=1 // pred_check_branch
      %41 = sbr.rel (0) target = $region21
    $region20: #{tpu_custom_call.1} parent=1 // pred_region
      %42 = dma.done [#allocation6], 1024
    $region21: #{tpu_custom_call.1} parent=1 // pred_fallthru
      _
    %v44 = vld [vmem:[#allocation2] sm:$0xf]
    %v45 = vld [vmem:[#allocation2 + $0x4] sm:$0xf]
    %v46 = vld [vmem:[#allocation5] sm:$0xf]
    %v47 = vld [vmem:[#allocation5 + $0x4] sm:$0xf]
    %v48 = vld [vmem:[#allocation5 + $0x8] sm:$0xf]
    %v49 = vld [vmem:[#allocation5 + $0xc] sm:$0xf]
    %v50 = vld [vmem:[#allocation5 + $0x10] sm:$0xf]
    %v51 = vld [vmem:[#allocation5 + $0x14] sm:$0xf]
    %v52 = vld [vmem:[#allocation5 + $0x18] sm:$0xf]
    %v53 = vld [vmem:[#allocation5 + $0x1c] sm:$0xf]
    %v54 = vld [vmem:[#allocation5 + $0x20] sm:$0xf]
    %v55 = vld [vmem:[#allocation5 + $0x24] sm:$0xf]
    %v56 = vld [vmem:[#allocation5 + $0x28] sm:$0xf]
    %v57 = vld [vmem:[#allocation5 + $0x2c] sm:$0xf]
    %v58 = vld [vmem:[#allocation5 + $0x30] sm:$0xf]
    %v59 = vld [vmem:[#allocation5 + $0x34] sm:$0xf]
    %v60 = vld [vmem:[#allocation5 + $0x38] sm:$0xf]
    %v61 = vld [vmem:[#allocation5 + $0x3c] sm:$0xf]
    %v62 = vld [vmem:[%s2] sm:$0x1]
    %v64 = vlaneseq
    %v65 = vshrl.u32 %v64, 7
    %v66 = vsub.s32 0, %v65
    %v67 = vrot.slane %v62, %v66
    %v71 = vunpack.c.l.b16 %v44
    %v72 = vunpack.c.l.b16 %v45
    %v73 = vpack.c.b16 %v72, %v71
    %v91 = vunpack.c.l.b16 %v46
    %v92 = vunpack.c.l.b16 %v47
    %v93 = vunpack.c.l.b16 %v48
    %v94 = vunpack.c.l.b16 %v49
    %v95 = vunpack.c.l.b16 %v50
    %v96 = vunpack.c.l.b16 %v51
    %v97 = vunpack.c.l.b16 %v52
    %v98 = vunpack.c.l.b16 %v53
    %v99 = vunpack.c.l.b16 %v54
    %v100 = vunpack.c.l.b16 %v55
    %v101 = vunpack.c.l.b16 %v56
    %v102 = vunpack.c.l.b16 %v57
    %v103 = vunpack.c.l.b16 %v58
    %v104 = vunpack.c.l.b16 %v59
    %v105 = vunpack.c.l.b16 %v60
    %v106 = vunpack.c.l.b16 %v61
    %v107 = vpack.c.b16 %v92, %v91
    %v108 = vpack.c.b16 %v94, %v93
    %v109 = vpack.c.b16 %v96, %v95
    %v110 = vpack.c.b16 %v98, %v97
    %v111 = vpack.c.b16 %v100, %v99
    %v112 = vpack.c.b16 %v102, %v101
    %v113 = vpack.c.b16 %v104, %v103
    %v114 = vpack.c.b16 %v106, %v105
    %123 = vmatprep.subr.bf16.mxu0 0
    %124 = vmatpush1.bf16.msra.mxu0 %v107
    %125 = vmatprep.subr.bf16.mxu0 0
    %126 = vmatpush1.bf16.msra.mxu0 %v108
    %127 = vmatprep.subr.bf16.mxu0 0
    %128 = vmatpush1.bf16.msra.mxu0 %v109
    %129 = vmatprep.subr.bf16.mxu0 0
    %130 = vmatpush1.bf16.msra.mxu0 %v110
    %131 = vmatprep.subr.bf16.mxu0 0
    %132 = vmatpush1.bf16.msra.mxu0 %v111
    %133 = vmatprep.subr.bf16.mxu0 0
    %134 = vmatpush1.bf16.msra.mxu0 %v112
    %135 = vmatprep.subr.bf16.mxu0 0
    %136 = vmatpush1.bf16.msra.mxu0 %v113
    %137 = vmatprep.subr.bf16.mxu0 0
    %138 = vmatpush1.bf16.msra.mxu0 %v114
    %139 = vmatprep.subr.bf16.mxu0 0
    %140 = vmatpush1.bf16.msra.mxu0 0
    %141 = vmatprep.subr.bf16.mxu0 0
    %142 = vmatpush1.bf16.msra.mxu0 0
    %143 = vmatprep.subr.bf16.mxu0 0
    %144 = vmatpush1.bf16.msra.mxu0 0
    %145 = vmatprep.subr.bf16.mxu0 0
    %146 = vmatpush1.bf16.msra.mxu0 0
    %147 = vmatprep.subr.bf16.mxu0 0
    %148 = vmatpush1.bf16.msra.mxu0 0
    %149 = vmatprep.subr.bf16.mxu0 0
    %150 = vmatpush1.bf16.msra.mxu0 0
    %151 = vmatprep.subr.bf16.mxu0 0
    %152 = vmatpush1.bf16.msra.mxu0 0
    %153 = vmatprep.subr.bf16.mxu0 0
    %154 = vmatpush1.bf16.msra.mxu0 0
    %155 = vmatprep.mubr.bf16.mxu0 0
    %156 = vmatmul.mubr.bf16.gmra.mrb[0].mxu0 %v73
    %v157 = vpop.f32.mrb[0].mxu0
    %v158 = vadd.f32 %v67, %v157
    %v159 = vpop.f32.mrb[0].mxu0
    %v160 = vpop.f32.mrb[0].mxu0
    %v161 = vadd.f32 %v67, %v160
    %v162 = vpop.f32.mrb[0].mxu0
    %163 = vdwg.mxu0
    %164 = vst [vmem:[#allocation7] sm:$0xff] %v158
    %165 = vst [vmem:[#allocation7 + $0x8] sm:$0xff] %v161
    // Predicated region
    $region22: #{tpu_custom_call.1} parent=1 // pred_check
      _
    $region23: #{tpu_custom_call.1} parent=1 // pred_check_branch
      %167 = sbr.rel (0) target = $region25
    $region24: #{tpu_custom_call.1} parent=1 // pred_region
      %s169 = ssub.s32 256, 256
      %170 = vsyncadd [#allocation4], %s169
      %s171 = sshll.u32 [#allocation7], 4
      %s172 = int_to_ptr.vmem [resolvable:$true] %s171
      %177 = dma.vmem_to_hbm [thread:$0]  %s172, 256, %s3, [#allocation4], 128, 128, 8
    $region25: #{tpu_custom_call.1} parent=1 // pred_fallthru
      _
    // Predicated region
    $region26: #{tpu_custom_call.1} parent=1 // pred_check
      _
    $region27: #{tpu_custom_call.1} parent=1 // pred_check_branch
      %179 = sbr.rel (0) target = $region29
    $region28: #{tpu_custom_call.1} parent=1 // pred_region
      %180 = dma.done [#allocation4], 256
    $region29: #{tpu_custom_call.1} parent=1 // pred_fallthru
      _
    %181 = vsyncpa [#allocation3], 1
    %182 = vsyncpa [#allocation6], 1
    %183 = vsyncpa [#allocation4], 1

</llo_original>
